<compile_context>
chip_gen: v6e
topology: v6e:2x2x1
jax: 0.10.0
libtpu: 0.0.40
codegen_flags: <defaults>
</compile_context>

<pallas_src>
import math

import jax
import jax.numpy as jnp
from jax.experimental import pallas as pl
from jax.experimental.pallas import tpu as pltpu

INPUT_SIZE = 187
H1, H2, H3 = 100, 50, 50
NUM_CLASSES = 1

_LANE = 128
_ROW_QUANTUM = 1024           # tile_m multiple of 1024 keeps the (tile_m//128, 128)
                              # output block (8,128)-aligned.
_WHOLE_ARRAY_MAX_ROWS = 1024  # below this, a single whole-array block is cheapest.
_MIB = 1024 * 1024


def _cdiv(a, b):
    return -(-a // b)


def _round_up(n, m):
    return _cdiv(n, m) * m


# ----------------------------------------------------------------------------- kernels


def _matvec_col_kernel(x_ref, w_ref, b_ref, o_ref):
    # x: (rows, 187)  w: (187, 1)  b: (1, 1)  o: (rows, 1)
    acc = jnp.dot(x_ref[...], w_ref[...], preferred_element_type=jnp.float32)
    o_ref[...] = (acc + b_ref[...]).astype(o_ref.dtype)


def _matvec_lane_dense_kernel(x_ref, w_ref, b_ref, o_ref):
    # x: (tile_m, 187)  w: (187, 1)  b: (1, 1)  o: (tile_m//128, 128)
    acc = jnp.dot(x_ref[...], w_ref[...], preferred_element_type=jnp.float32)  # (tile_m, 1)
    acc = acc + b_ref[...]
    # (tile_m, 1) -> (tile_m//128, 128): XLU relayout, fully hidden under the next x DMA.
    o_ref[...] = acc.reshape(o_ref.shape).astype(o_ref.dtype)


# --------------------------------------------------------------------------- wrappers


def _pick_config(batch, tile_m, lane_dense):
    """Choose (tile_m, vmem_limit_bytes) for the tiled path, per TPU generation."""
    try:
        vmem_cap = int(pltpu.get_tpu_info().vmem_capacity_bytes)
    except Exception:
        vmem_cap = 64 * _MIB  # assume the smallest (v7x per-TC) if the query fails
    if vmem_cap >= 100 * _MIB:        # v5e / v6e: 128 MiB physical VMEM
        default_tile, vmem_cap_limit = 16384, 80 * _MIB
    else:                             # v7x: 64 MiB per TensorCore
        default_tile, vmem_cap_limit = 12288, 44 * _MIB

    if tile_m is None:
        tile_m = default_tile
    tile_m = _round_up(max(tile_m, _ROW_QUANTUM), _ROW_QUANTUM)
    # Keep >= ~8 grid steps on large batches: shards across both v7x TensorCores via the
    # "parallel" axis and gives the BlockSpec pipeline cross-step DMA/compute overlap.
    tile_m = min(tile_m, _round_up(_cdiv(batch, 8), _ROW_QUANTUM))

    def working_set(t):
        x_buf = t * _round_up(INPUT_SIZE, _LANE) * 4       # K=187 pads to 256 lanes
        o_buf = t * 4 if lane_dense else t * _LANE * 4     # lane-dense vs lane-padded col
        return 2 * (x_buf + o_buf)                         # double-buffered pipeline

    while tile_m > _ROW_QUANTUM and working_set(tile_m) + 8 * _MIB > vmem_cap_limit:
        tile_m -= _ROW_QUANTUM
    vmem_limit = max(32 * _MIB, min(vmem_cap_limit, working_set(tile_m) + 12 * _MIB))
    return tile_m, vmem_limit


def _forward_whole(x, w, b):
    """Small batches: one whole-array block in VMEM, minimal launch/DMA latency."""
    batch = x.shape[0]
    return pl.pallas_call(
        _matvec_col_kernel,
        out_shape=jax.ShapeDtypeStruct((batch, NUM_CLASSES), jnp.float32),
    )(x, w, b)


def _forward_tiled(x, w, b, tile_m, vmem_limit, lane_dense):
    batch = x.shape[0]
    # Ragged last block is clamped by Pallas; correct because each output row is written
    # exactly once and independently.
    num_tiles = _cdiv(batch, tile_m)

    in_specs = [
        # x: one (tile_m, 187) slab per step, double-buffered HBM->VMEM by the pipeline.
        # (v7x sweep candidate once VMEM is freed by the lane-dense output:
        #  pipeline_mode=pl.Buffered(3) on this spec.)
        pl.BlockSpec((tile_m, INPUT_SIZE), lambda i: (i, 0)),
        # Fused weight / bias: constant block index -> resident across all grid steps.
        pl.BlockSpec((INPUT_SIZE, NUM_CLASSES), lambda i: (0, 0)),
        pl.BlockSpec((1, NUM_CLASSES), lambda i: (0, 0)),
    ]
    compiler_params = pltpu.CompilerParams(
        dimension_semantics=("parallel",),   # independent batch tiles -> both TCs on v7x
        vmem_limit_bytes=vmem_limit,
    )

    if lane_dense:
        rows128 = tile_m // _LANE
        out = pl.pallas_call(
            _matvec_lane_dense_kernel,
            out_shape=jax.ShapeDtypeStruct((num_tiles * rows128, _LANE), jnp.float32),
            grid=(num_tiles,),
            in_specs=in_specs,
            out_specs=pl.BlockSpec((rows128, _LANE), lambda i: (i, 0)),
            compiler_params=compiler_params,
        )(x, w, b)
        # Rows >= batch in the last tile came from the clamped input block (garbage): drop.
        return out.reshape(-1)[:batch].reshape(batch, NUM_CLASSES)

    out = pl.pallas_call(
        _matvec_col_kernel,
        out_shape=jax.ShapeDtypeStruct((batch, NUM_CLASSES), jnp.float32),
        grid=(num_tiles,),
        in_specs=in_specs,
        out_specs=pl.BlockSpec((tile_m, NUM_CLASSES), lambda i: (i, 0)),
        compiler_params=compiler_params,
    )(x, w, b)
    return out


_lane_dense_supported = True  # flipped once if this Mosaic build rejects the relayout


def fuse_params(params):
    """Fold the four Linear layers into a single affine map (valid because the module has
    no activation/dropout/norm between layers).  Call once per parameter set and reuse."""
    w = params["w1"] @ params["w2"] @ params["w3"] @ params["w4"]                   # (187, 1)
    b = ((params["b1"] @ params["w2"] + params["b2"]) @ params["w3"]
         + params["b3"]) @ params["w4"] + params["b4"]                              # (1, 1)
    return w, b


def neural_net_forward(x, w_fused, b_fused, *, tile_m=None):
    """Forward pass of NeuralNet.  x: (batch, 187); (w_fused, b_fused) from fuse_params()."""
    global _lane_dense_supported
    batch = x.shape[0]
    w = w_fused.astype(x.dtype)          # follows x's precision (no-op for f32)
    b = b_fused.astype(jnp.float32)      # bias added in the f32 accumulator

    if batch <= _WHOLE_ARRAY_MAX_ROWS:
        return _forward_whole(x, w, b)

    if _lane_dense_supported:
        tm, vmem = _pick_config(batch, tile_m, lane_dense=True)
        try:
            return _forward_tiled(x, w, b, tm, vmem, lane_dense=True)
        except Exception:
            # Toolchain without the (M,1)->(M/128,128) shape-cast: fall back once and
            # remember (note: the fallback only triggers when called eagerly, not under
            # an outer jax.jit).
            _lane_dense_supported = False
    tm, vmem = _pick_config(batch, tile_m, lane_dense=False)
    return _forward_tiled(x, w, b, tm, vmem, lane_dense=False)


# ------------------------------------------------------------------- reference & init


def init_params(key):
    """Deterministic init mimicking PyTorch nn.Linear default (uniform +/- 1/sqrt(fan_in))."""
    dims = [(INPUT_SIZE, H1), (H1, H2), (H2, H3), (H3, NUM_CLASSES)]
    params = {}
    for i, (fan_in, fan_out) in enumerate(dims, start=1):
        key, kw, kb = jax.random.split(key, 3)
        bound = 1.0 / math.sqrt(fan_in)
        # Stored as (in, out) == transpose of PyTorch's (out, in) weight.
        params[f"w{i}"] = jax.random.uniform(
            kw, (fan_in, fan_out), jnp.float32, minval=-bound, maxval=bound)
        params[f"b{i}"] = jax.random.uniform(
            kb, (1, fan_out), jnp.float32, minval=-bound, maxval=bound)
    return params


def reference_forward(x, params):
    """Unfused 4-layer chain, matching the PyTorch module's forward literally."""
    h = x @ params["w1"] + params["b1"]
    h = h @ params["w2"] + params["b2"]
    h = h @ params["w3"] + params["b3"]
    return h @ params["w4"] + params["b4"]


if __name__ == "__main__":
    key = jax.random.PRNGKey(0)
    key, kp = jax.random.split(key)
    params = init_params(kp)
    w_fused, b_fused = fuse_params(params)   # hoisted: fold once, reuse for every forward

    # 1) Small batch -> single whole-array block path.
    key, kx = jax.random.split(key)
    x_small = jax.random.normal(kx, (8, INPUT_SIZE), jnp.float32)
    out_small = jax.block_until_ready(neural_net_forward(x_small, w_fused, b_fused))
    ref_small = reference_forward(x_small, params)
    assert out_small.shape == (8, NUM_CLASSES)
    assert jnp.allclose(out_small, ref_small, atol=1e-4, rtol=1e-4)

    # 2) Tiled path: 3 grid steps, ragged (clamped) last block, lane-dense output blocks.
    key, kx2 = jax.random.split(key)
    batch2 = 2100
    x_big = jax.random.normal(kx2, (batch2, INPUT_SIZE), jnp.float32)
    out_big = jax.block_until_ready(
        neural_net_forward(x_big, w_fused, b_fused, tile_m=1024))
    ref_big = reference_forward(x_big, params)
    assert out_big.shape == (batch2, NUM_CLASSES)
    assert jnp.allclose(out_big, ref_big, atol=1e-4, rtol=1e-4)

    print("KERNEL_OK")
</pallas_src>

<mosaic_0001>
module attributes {stable_mosaic.version = 11 : i64} {
  func.func @_matvec_col_kernel(%arg0: memref<8x187xf32, #tpu.memory_space<vmem>>, %arg1: memref<187x1xf32, #tpu.memory_space<vmem>>, %arg2: memref<1x1xf32, #tpu.memory_space<vmem>>, %arg3: memref<8x1xf32, #tpu.memory_space<vmem>>) attributes {dimension_semantics = [], scalar_prefetch = 0 : i64, scratch_operands = 0 : i64, tpu.core_type = #tpu.core_type<tc>} {
    %c0 = arith.constant 0 : index
    %c0_0 = arith.constant 0 : index
    %0 = vector.load %arg0[%c0, %c0_0] : memref<8x187xf32, #tpu.memory_space<vmem>>, vector<8x187xf32>
    %c0_1 = arith.constant 0 : index
    %c0_2 = arith.constant 0 : index
    %1 = vector.load %arg1[%c0_1, %c0_2] : memref<187x1xf32, #tpu.memory_space<vmem>>, vector<187x1xf32>
    %cst = arith.constant dense<0.000000e+00> : vector<8x1xf32>
    %2 = tpu.matmul %0, %1, %cst {dimension_numbers = #tpu.dot_dimension_numbers<[1], [0], [0], [1], [0, 0, 1, 1], [], []>} : vector<8x187xf32>, vector<187x1xf32>, vector<8x1xf32> -> vector<8x1xf32>
    %c0_3 = arith.constant 0 : index
    %c0_4 = arith.constant 0 : index
    %3 = vector.load %arg2[%c0_3, %c0_4] : memref<1x1xf32, #tpu.memory_space<vmem>>, vector<1x1xf32>
    %4 = vector.broadcast %3 : vector<1x1xf32> to vector<8x1xf32>
    %5 = arith.addf %2, %4 : vector<8x1xf32>
    %c0_5 = arith.constant 0 : index
    %c0_6 = arith.constant 0 : index
    %6 = vector.load %arg3[%c0_5, %c0_6] : memref<8x1xf32, #tpu.memory_space<vmem>>, vector<8x1xf32>
    tpu.vector_store %arg3[%c0_5, %c0_6], %5 {strides = array<i32>} : memref<8x1xf32, #tpu.memory_space<vmem>>, vector<8x1xf32>,
    return
  }
}

</mosaic_0001>

<llo_original>
// kernel: tpu_custom_call.1
$region0: #{tpu_custom_call.1}
  #allocation0 [shape = 'u32[]', space=smem, size = 0x4, offset = 0x4, fixed_abs, tag = 'smem constant byte address 0x4 - core index']
  #allocation1 [shape = 'u32[144,128]{1,0:T(1,128)}', space=vmem, size = 0x12000, scoped, tag = 'internal scratch']
  #allocation2 [shape = 'f32[1,1]{1,0:T(1,128)S(1)}', space=vmem, size = 0x200, scoped, tag = 'scoped memory for tpu_custom_call.1']
  %s0 = inlined_call_operand.vmem [shape: f32[8,187], index: 0, kind: input, shape index: {}]
  %s1 = inlined_call_operand.vmem [shape: f32[187,1], index: 1, kind: input, shape index: {}]
  %s2 = inlined_call_operand.<no memory space> [shape: f32[1,1], index: 2, kind: input, shape index: {}]
  %s3 = inlined_call_operand.vmem [shape: f32[8,1], index: 3, kind: output, shape index: {}]
  %s4 = sld [smem:[#allocation0]]
  $region22: #{tpu_custom_call.1} parent=0
    _
  %s6 = ssub.s32 1, %s4
  %s7 = scalar_select 0, %s6, %s4
  %v8 = vstv %s2
  %9 = vst [vmem:[#allocation2] sm:$0x1] %v8
  // Predicated region
  $region2: #{tpu_custom_call.1} parent=0 // pred_check
    _
  $region3: #{tpu_custom_call.1} parent=0 // pred_check_branch
    %11 = sbr.rel (0) target = $region5
  $region4: #{tpu_custom_call.1} parent=0 // pred_region
    _
  $region5: #{tpu_custom_call.1} parent=0 // pred_fallthru
    _
  // Predicated region
  $region6: #{tpu_custom_call.1} parent=0 // pred_check
    _
  $region7: #{tpu_custom_call.1} parent=0 // pred_check_branch
    %13 = sbr.rel (0) target = $region9
  $region8: #{tpu_custom_call.1} parent=0 // pred_region
    _
  $region9: #{tpu_custom_call.1} parent=0 // pred_fallthru
    _
  // Predicated region
  $region10: #{tpu_custom_call.1} parent=0 // pred_check
    _
  $region11: #{tpu_custom_call.1} parent=0 // pred_check_branch
    %15 = sbr.rel (0) target = $region13
  $region12: #{tpu_custom_call.1} parent=0 // pred_region
    _
  $region13: #{tpu_custom_call.1} parent=0 // pred_fallthru
    _
  %v16 = vld [vmem:[%s0] sm:$0xff]
  %v17 = vld [vmem:[%s0 + $0x8] sm:$0xff]
  %v18 = vld [vmem:[%s1] sm:$0xff]
  %v19 = vld [vmem:[%s1 + $0x8] sm:$0xff]
  %v20 = vld [vmem:[%s1 + $0x10] sm:$0xff]
  %v21 = vld [vmem:[%s1 + $0x18] sm:$0xff]
  %v22 = vld [vmem:[%s1 + $0x20] sm:$0xff]
  %v23 = vld [vmem:[%s1 + $0x28] sm:$0xff]
  %v24 = vld [vmem:[%s1 + $0x30] sm:$0xff]
  %v25 = vld [vmem:[%s1 + $0x38] sm:$0xff]
  %v26 = vld [vmem:[%s1 + $0x40] sm:$0xff]
  %v27 = vld [vmem:[%s1 + $0x48] sm:$0xff]
  %v28 = vld [vmem:[%s1 + $0x50] sm:$0xff]
  %v29 = vld [vmem:[%s1 + $0x58] sm:$0xff]
  %v30 = vld [vmem:[%s1 + $0x60] sm:$0xff]
  %v31 = vld [vmem:[%s1 + $0x68] sm:$0xff]
  %v32 = vld [vmem:[%s1 + $0x70] sm:$0xff]
  %v33 = vld [vmem:[%s1 + $0x78] sm:$0xff]
  %v34 = vld [vmem:[%s1 + $0x80] sm:$0xff]
  %v35 = vld [vmem:[%s1 + $0x88] sm:$0xff]
  %v36 = vld [vmem:[%s1 + $0x90] sm:$0xff]
  %v37 = vld [vmem:[%s1 + $0x98] sm:$0xff]
  %v38 = vld [vmem:[%s1 + $0xa0] sm:$0xff]
  %v39 = vld [vmem:[%s1 + $0xa8] sm:$0xff]
  %v40 = vld [vmem:[%s1 + $0xb0] sm:$0xff]
  %v41 = vld [vmem:[%s1 + $0xb8] sm:$0x7]
  %v42 = vld [vmem:[#allocation2] sm:$0x1]
  %v44 = vlaneseq
  %v45 = vshrl.u32 %v44, 7
  %v46 = vsub.s32 0, %v45
  %v47 = vrot.slane %v42, %v46
  %vm49 = vcmask 482304
  %v51 = vsel %vm49, %v17, 0
  %vm53 = vcmask 1042432
  %v55 = vsel %vm53, %v41, 0
  %57 = vmatprep.subr.mxu0 0.0
  %58 = vmatpush1.msra.mxu0 %v33
  %59 = vmatprep.subr.mxu0 0.0
  %60 = vmatpush1.msra.mxu0 %v32
  %61 = vmatprep.subr.mxu0 0.0
  %62 = vmatpush1.msra.mxu0 %v31
  %63 = vmatprep.subr.mxu0 0.0
  %64 = vmatpush1.msra.mxu0 %v30
  %65 = vmatprep.subr.mxu0 0.0
  %66 = vmatpush1.msra.mxu0 %v29
  %67 = vmatprep.subr.mxu0 0.0
  %68 = vmatpush1.msra.mxu0 %v28
  %69 = vmatprep.subr.mxu0 0.0
  %70 = vmatpush1.msra.mxu0 %v27
  %71 = vmatprep.subr.mxu0 0.0
  %72 = vmatpush1.msra.mxu0 %v26
  %73 = vmatprep.subr.mxu0 0.0
  %74 = vmatpush1.msra.mxu0 %v25
  %75 = vmatprep.subr.mxu0 0.0
  %76 = vmatpush1.msra.mxu0 %v24
  %77 = vmatprep.subr.mxu0 0.0
  %78 = vmatpush1.msra.mxu0 %v23
  %79 = vmatprep.subr.mxu0 0.0
  %80 = vmatpush1.msra.mxu0 %v22
  %81 = vmatprep.subr.mxu0 0.0
  %82 = vmatpush1.msra.mxu0 %v21
  %83 = vmatprep.subr.mxu0 0.0
  %84 = vmatpush1.msra.mxu0 %v20
  %85 = vmatprep.subr.mxu0 0.0
  %86 = vmatpush1.msra.mxu0 %v19
  %87 = vmatprep.subr.mxu0 0.0
  %88 = vmatpush1.msra.mxu0 %v18
  %89 = vmatprep.subr.mxu0 0.0
  %90 = vmatpush2.msra.mxu0 0.0
  %91 = vmatprep.subr.mxu0 0.0
  %92 = vmatpush2.msra.mxu0 0.0
  %93 = vmatprep.subr.mxu0 0.0
  %94 = vmatpush2.msra.mxu0 0.0
  %95 = vmatprep.subr.mxu0 0.0
  %96 = vmatpush2.msra.mxu0 0.0
  %97 = vmatprep.subr.mxu0 0.0
  %98 = vmatpush2.msra.mxu0 0.0
  %99 = vmatprep.subr.mxu0 0.0
  %100 = vmatpush2.msra.mxu0 0.0
  %101 = vmatprep.subr.mxu0 0.0
  %102 = vmatpush2.msra.mxu0 0.0
  %103 = vmatprep.subr.mxu0 0.0
  %104 = vmatpush2.msra.mxu0 0.0
  %105 = vmatprep.subr.mxu0 0.0
  %106 = vmatpush2.msra.mxu0 %v55
  %107 = vmatprep.subr.mxu0 0.0
  %108 = vmatpush2.msra.mxu0 %v40
  %109 = vmatprep.subr.mxu0 0.0
  %110 = vmatpush2.msra.mxu0 %v39
  %111 = vmatprep.subr.mxu0 0.0
  %112 = vmatpush2.msra.mxu0 %v38
  %113 = vmatprep.subr.mxu0 0.0
  %114 = vmatpush2.msra.mxu0 %v37
  %115 = vmatprep.subr.mxu0 0.0
  %116 = vmatpush2.msra.mxu0 %v36
  %117 = vmatprep.subr.mxu0 0.0
  %118 = vmatpush2.msra.mxu0 %v35
  %119 = vmatprep.subr.mxu0 0.0
  %120 = vmatpush2.msra.mxu0 %v34
  %121 = vmatprep.mubr.f32.mxu0 %v51
  %122 = vmatmul.mubr.f32.gmra.mxu0 %v16
  %v123 = vpop.f32.mrf.mxu0
  %v124 = vadd.f32 %v47, %v123
  %v125 = vpop.f32.mrf.mxu0
  %126 = vdwg.mxu0
  %vm127 = vcmask 7168
  %128 = vst.msk [vmem:[%s3] sm:$0xff] %vm127, %v124
  // Predicated region
  $region14: #{tpu_custom_call.1} parent=0 // pred_check
    _
  $region15: #{tpu_custom_call.1} parent=0 // pred_check_branch
    %130 = sbr.rel (0) target = $region17
  $region16: #{tpu_custom_call.1} parent=0 // pred_region
    _
  $region17: #{tpu_custom_call.1} parent=0 // pred_fallthru
    _
  // Predicated region
  $region18: #{tpu_custom_call.1} parent=0 // pred_check
    _
  $region19: #{tpu_custom_call.1} parent=0 // pred_check_branch
    %132 = sbr.rel (0) target = $region21
  $region20: #{tpu_custom_call.1} parent=0 // pred_region
    _
  $region21: #{tpu_custom_call.1} parent=0 // pred_fallthru
    _

</llo_original>
